<compile_context>
chip_gen: v6e
topology: v6e:2x2x1
jax: 0.10.0
libtpu: 0.0.40
codegen_flags: <defaults>
</compile_context>

<pallas_src>
import jax
import jax.numpy as jnp
from jax.experimental import pallas as pl
from jax.experimental.pallas import tpu as pltpu


def _round_up(x: int, m: int) -> int:
    return ((x + m - 1) // m) * m


def _treeconv_matmul_kernel(a_ref, w_ref, bias_ref, o_ref):
    # (tm, K) @ (K, tn) on the MXU, f32 accumulate; bias epilogue rides in the
    # free VPU slot; single lane-dense (tm, tn) store.
    acc = jnp.dot(a_ref[...], w_ref[...], preferred_element_type=jnp.float32)
    o_ref[...] = (acc + bias_ref[...]).astype(o_ref.dtype)


def _treeconv_matmul(a2d, w2d, bias, out_dtype):
    """a2d: (M, K), w2d: (K, N), bias: (N,) -> (M, N) = a2d @ w2d + bias."""
    M, K = a2d.shape
    N = w2d.shape[1]

    # Pad only the (tiny) N axis of W / bias to a lane-dense multiple of 128.
    # K is NOT padded: full-extent blocks along K are legal and avoid an
    # HBM-sized copy of A.  M is NOT padded: the ragged last row tile is
    # handled by Pallas (M is not a contraction axis, so garbage rows only
    # feed masked-off output rows).
    N_pad = _round_up(N, 128)
    w_p = jnp.zeros((K, N_pad), w2d.dtype).at[:, :N].set(w2d)
    b_p = jnp.zeros((1, N_pad), bias.dtype).at[0, :N].set(bias)

    tm = min(512, _round_up(M, 8))
    num_m = pl.cdiv(M, tm)

    cost = pl.CostEstimate(
        flops=2 * M * K * N_pad,
        transcendentals=0,
        bytes_accessed=4 * (M * K + K * N_pad + M * N_pad),
    )

    if N_pad <= 256:
        # Typical ConvTree C_out: collapse the N axis.  W and bias have
        # constant block indices -> fetched once; grid-step count halves.
        tn = N_pad
        grid = (num_m,)
        in_specs = [
            pl.BlockSpec((tm, K), lambda i: (i, 0)),     # A row tile (full K)
            pl.BlockSpec((K, tn), lambda i: (0, 0)),     # W, resident
            pl.BlockSpec((1, tn), lambda i: (0, 0)),     # bias, resident
        ]
        out_spec = pl.BlockSpec((tm, tn), lambda i: (i, 0))
        dims = ("parallel",)
    else:
        tn = 256
        grid = (num_m, N_pad // tn)
        in_specs = [
            pl.BlockSpec((tm, K), lambda i, j: (i, 0)),
            pl.BlockSpec((K, tn), lambda i, j: (0, j)),
            pl.BlockSpec((1, tn), lambda i, j: (0, j)),
        ]
        out_spec = pl.BlockSpec((tm, tn), lambda i, j: (i, j))
        dims = ("parallel", "parallel")

    out_p = pl.pallas_call(
        _treeconv_matmul_kernel,
        out_shape=jax.ShapeDtypeStruct((M, N_pad), out_dtype),
        grid_spec=pltpu.PrefetchScalarGridSpec(
            num_scalar_prefetch=0,
            grid=grid,
            in_specs=in_specs,
            out_specs=out_spec,
        ),
        compiler_params=pltpu.CompilerParams(dimension_semantics=dims),
        cost_estimate=cost,
    )(a2d, w_p, b_p)

    return out_p[:, :N]


def conv_tree_forward(weight, bias, flattened_tree_and_indexes):
    """weight: (C_out, C_in, 3), bias: (C_out,); input tuple (trees, indexes)."""
    trees, indexes = flattened_tree_and_indexes
    B, C_in, _ = trees.shape
    L = indexes.shape[1]
    C_out = weight.shape[0]
    T = (L - 3) // 3 + 1  # Conv1d(kernel=3, stride=3) output length

    # TODO(synk): the data-dependent node gather stays in XLA; it could be
    # folded into the kernel with PrefetchScalarGridSpec(num_scalar_prefetch=1)
    # (indexes in SMEM, trees resident in VMEM per batch) to save one more
    # A-sized HBM pass, at the cost of a per-row dynamic-sublane gather loop.
    #
    # Transpose trees once (tiny, N_nodes x C_in per batch) and gather along
    # the node axis so the large intermediate comes out directly in the
    # row-major (B*T, 3*C_in) im2col layout the kernel consumes.
    trees_t = jnp.transpose(trees, (0, 2, 1))                     # (B, N_nodes, C_in)
    idx = jnp.broadcast_to(indexes[..., 0:1], (B, L, C_in)).astype(jnp.int32)
    gathered = jnp.take_along_axis(trees_t, idx, axis=1)          # (B, L, C_in)
    a2d = gathered[:, : 3 * T, :].reshape(B * T, 3 * C_in)        # row = (k, c) flat

    # Matching weight layout: W2[k*C_in + c, o] = weight[o, c, k]
    w2d = jnp.transpose(weight, (2, 1, 0)).reshape(3 * C_in, C_out)

    out2d = _treeconv_matmul(a2d, w2d, bias, trees.dtype)         # (B*T, C_out)

    # Output epilogue (shape contract of the PyTorch module): (B, C_out, T+1)
    # with a zero column prepended.  Output-sized only, kept in XLA.
    results = out2d.reshape(B, T, C_out).transpose(0, 2, 1)       # (B, C_out, T)
    zeros = jnp.zeros((B, C_out, 1), results.dtype)
    results = jnp.concatenate([zeros, results], axis=2)           # (B, C_out, T+1)
    return results, indexes


def _reference(weight, bias, trees, indexes):
    B, C_in, _ = trees.shape
    L = indexes.shape[1]
    C_out = weight.shape[0]
    T = (L - 3) // 3 + 1
    idx_b = jnp.broadcast_to(indexes[:, :, 0][:, None, :], (B, C_in, L))
    gathered = jnp.take_along_axis(trees, idx_b, axis=2)
    g = gathered[:, :, : 3 * T].reshape(B, C_in, T, 3)
    conv = (
        jnp.einsum("bctk,ock->bot", g, weight, precision=jax.lax.Precision.HIGHEST)
        + bias[None, :, None]
    )
    return jnp.concatenate([jnp.zeros((B, C_out, 1), conv.dtype), conv], axis=2)


def _run_case(key, B, C_in, C_out, N_nodes, T):
    k_tree, k_idx, k_w, k_b = jax.random.split(key, 4)
    L = 3 * T
    trees = jax.random.normal(k_tree, (B, C_in, N_nodes), dtype=jnp.float32)
    indexes = jax.random.randint(k_idx, (B, L, 1), 0, N_nodes, dtype=jnp.int32)
    weight = 0.1 * jax.random.normal(k_w, (C_out, C_in, 3), dtype=jnp.float32)
    bias = 0.1 * jax.random.normal(k_b, (C_out,), dtype=jnp.float32)

    out_feats, out_idx = conv_tree_forward(weight, bias, (trees, indexes))
    out_feats = jax.block_until_ready(out_feats)
    out_idx = jax.block_until_ready(out_idx)

    ref = _reference(weight, bias, trees, indexes)
    assert out_feats.shape == (B, C_out, T + 1)
    assert out_idx.shape == indexes.shape
    assert jnp.array_equal(out_idx, indexes)
    err = float(jnp.max(jnp.abs(out_feats - ref)))
    assert jnp.allclose(out_feats, ref, atol=1e-3, rtol=1e-3), err


if __name__ == "__main__":
    key = jax.random.PRNGKey(0)
    k1, k2 = jax.random.split(key, 2)

    # Small case (single row tile, collapsed N grid).
    _run_case(k1, B=2, C_in=8, C_out=16, N_nodes=16, T=8)

    # Larger case exercising tm=512, two M tiles and a ragged last tile.
    _run_case(k2, B=4, C_in=8, C_out=32, N_nodes=32, T=150)

    print("KERNEL_OK")
</pallas_src>

<mosaic_0001>
module attributes {stable_mosaic.version = 11 : i64} {
  func.func @_treeconv_matmul_kernel(%arg0: i32, %arg1: memref<16x24xf32, #tpu.memory_space<vmem>>, %arg2: memref<24x128xf32, #tpu.memory_space<vmem>>, %arg3: memref<1x128xf32, #tpu.memory_space<vmem>>, %arg4: memref<16x128xf32, #tpu.memory_space<vmem>>) attributes {dimension_semantics = [#tpu.dimension_semantics<parallel>], iteration_bounds = array<i64: 1>, scalar_prefetch = 0 : i64, scratch_operands = 0 : i64, tpu.core_type = #tpu.core_type<tc>, window_params = [{transform_indices = @transform_0, window_bounds = array<i64: 16, 24>}, {pipeline_mode = #tpu.pipeline_mode<synchronous>, transform_indices = @transform_1, window_bounds = array<i64: 24, 128>}, {pipeline_mode = #tpu.pipeline_mode<synchronous>, transform_indices = @transform_2, window_bounds = array<i64: 1, 128>}, {transform_indices = @transform_3, window_bounds = array<i64: 16, 128>}]} {
    %c0 = arith.constant 0 : index
    %c0_0 = arith.constant 0 : index
    %0 = vector.load %arg1[%c0, %c0_0] : memref<16x24xf32, #tpu.memory_space<vmem>>, vector<16x24xf32>
    %c0_1 = arith.constant 0 : index
    %c0_2 = arith.constant 0 : index
    %1 = vector.load %arg2[%c0_1, %c0_2] : memref<24x128xf32, #tpu.memory_space<vmem>>, vector<24x128xf32>
    %cst = arith.constant dense<0.000000e+00> : vector<16x128xf32>
    %2 = tpu.matmul %0, %1, %cst {dimension_numbers = #tpu.dot_dimension_numbers<[1], [0], [0], [1], [0, 0, 1, 1], [], []>} : vector<16x24xf32>, vector<24x128xf32>, vector<16x128xf32> -> vector<16x128xf32>
    %c0_3 = arith.constant 0 : index
    %c0_4 = arith.constant 0 : index
    %3 = vector.load %arg3[%c0_3, %c0_4] : memref<1x128xf32, #tpu.memory_space<vmem>>, vector<1x128xf32>
    %4 = vector.broadcast %3 : vector<1x128xf32> to vector<16x128xf32>
    %5 = arith.addf %2, %4 : vector<16x128xf32>
    %c0_5 = arith.constant 0 : index
    %c0_6 = arith.constant 0 : index
    %6 = vector.load %arg4[%c0_5, %c0_6] : memref<16x128xf32, #tpu.memory_space<vmem>>, vector<16x128xf32>
    tpu.vector_store %arg4[%c0_5, %c0_6], %5 {strides = array<i32>} : memref<16x128xf32, #tpu.memory_space<vmem>>, vector<16x128xf32>,
    return
  }
  func.func @transform_0(%arg0: i32) -> (i32, i32) {
    %c0_i32 = arith.constant 0 : i32
    %c0_i32_0 = arith.constant 0 : i32
    return %arg0, %c0_i32 : i32, i32
  }
  func.func @transform_1(%arg0: i32) -> (i32, i32) {
    %c0_i32 = arith.constant 0 : i32
    %c0_i32_0 = arith.constant 0 : i32
    %c0_i32_1 = arith.constant 0 : i32
    return %c0_i32, %c0_i32_0 : i32, i32
  }
  func.func @transform_2(%arg0: i32) -> (i32, i32) {
    %c0_i32 = arith.constant 0 : i32
    %c0_i32_0 = arith.constant 0 : i32
    %c0_i32_1 = arith.constant 0 : i32
    return %c0_i32, %c0_i32_0 : i32, i32
  }
  func.func @transform_3(%arg0: i32) -> (i32, i32) {
    %c0_i32 = arith.constant 0 : i32
    %c0_i32_0 = arith.constant 0 : i32
    return %arg0, %c0_i32 : i32, i32
  }
}

</mosaic_0001>

<llo_original>
// kernel: tpu_custom_call.1
$region0: #{tpu_custom_call.1}
  #allocation0 [shape = 'u32[]', space=smem, size = 0x4, offset = 0x4, fixed_abs, tag = 'smem constant byte address 0x4 - core index']
  #allocation1 [shape = 'u32[144,128]{1,0:T(1,128)}', space=vmem, size = 0x12000, scoped, tag = 'internal scratch']
  %s0 = inlined_call_operand.hbm [shape: f32[16,24], index: 0, kind: input, shape index: {}]
  %s1 = inlined_call_operand.hbm [shape: f32[24,128], index: 1, kind: input, shape index: {}]
  %s2 = inlined_call_operand.vmem [shape: f32[1,128], index: 2, kind: input, shape index: {}]
  %s3 = inlined_call_operand.hbm [shape: f32[16,128], index: 3, kind: output, shape index: {}]
  %s4 = sld [smem:[#allocation0]]
  $region30: #{tpu_custom_call.1} parent=0
    _
  %s6 = ssub.s32 1, %s4
  %s7 = scalar_select 0, %s6, %s4
  $region1: #{tpu_custom_call.1} parent=0
    #allocation2 [shape = 'u8[8192]{0}', space=vmem, size = 0x2000, scoped, tag = 'input window, operand 0, single buffered']
    #allocation3 [shape = 's32[1]{0}', space=sflag, size = 0x4, scoped, tag = 'scoped memory for tpu_custom_call.1']
    #allocation4 [shape = 's32[1]{0}', space=sflag, size = 0x4, scoped, tag = 'scoped memory for tpu_custom_call.1']
    #allocation5 [shape = 'u8[12288]{0}', space=vmem, size = 0x3000, scoped, tag = 'input window, operand 1, single buffered']
    #allocation6 [shape = 's32[1]{0}', space=sflag, size = 0x4, scoped, tag = 'scoped memory for tpu_custom_call.1']
    #allocation7 [shape = 'u8[8192]{0}', space=vmem, size = 0x2000, scoped, tag = 'output window, operand 0, single buffered']
    %8 = vsyncpa [#allocation3], 0
    %9 = vsyncpa [#allocation6], 0
    %10 = vsyncpa [#allocation4], 0
    // Predicated region
    $region2: #{tpu_custom_call.1} parent=1 // pred_check
      _
    $region3: #{tpu_custom_call.1} parent=1 // pred_check_branch
      %12 = sbr.rel (0) target = $region5
    $region4: #{tpu_custom_call.1} parent=1 // pred_region
      %s14 = ssub.s32 256, 256
      %15 = vsyncadd [#allocation3], %s14
      %s16 = sshll.u32 [#allocation2], 4
      %s17 = int_to_ptr.vmem [resolvable:$true] %s16
      %22 = dma.hbm_to_vmem [thread:$0]  %s0, 256, %s17, [#allocation3], 128, 128, 8
    $region5: #{tpu_custom_call.1} parent=1 // pred_fallthru
      _
    // Predicated region
    $region6: #{tpu_custom_call.1} parent=1 // pred_check
      _
    $region7: #{tpu_custom_call.1} parent=1 // pred_check_branch
      %24 = sbr.rel (0) target = $region9
    $region8: #{tpu_custom_call.1} parent=1 // pred_region
      %s26 = ssub.s32 384, 384
      %27 = vsyncadd [#allocation6], %s26
      %s28 = sshll.u32 [#allocation5], 4
      %s29 = int_to_ptr.vmem [resolvable:$true] %s28
      %34 = dma.hbm_to_vmem [thread:$0]  %s1, 384, %s29, [#allocation6], 128, 128, 8
    $region9: #{tpu_custom_call.1} parent=1 // pred_fallthru
      _
    // Predicated region
    $region10: #{tpu_custom_call.1} parent=1 // pred_check
      _
    $region11: #{tpu_custom_call.1} parent=1 // pred_check_branch
      %36 = sbr.rel (0) target = $region13
    $region12: #{tpu_custom_call.1} parent=1 // pred_region
      _
    $region13: #{tpu_custom_call.1} parent=1 // pred_fallthru
      _
    // Predicated region
    $region14: #{tpu_custom_call.1} parent=1 // pred_check
      _
    $region15: #{tpu_custom_call.1} parent=1 // pred_check_branch
      %38 = sbr.rel (0) target = $region17
    $region16: #{tpu_custom_call.1} parent=1 // pred_region
      %39 = dma.done [#allocation3], 256
    $region17: #{tpu_custom_call.1} parent=1 // pred_fallthru
      _
    // Predicated region
    $region18: #{tpu_custom_call.1} parent=1 // pred_check
      _
    $region19: #{tpu_custom_call.1} parent=1 // pred_check_branch
      %41 = sbr.rel (0) target = $region21
    $region20: #{tpu_custom_call.1} parent=1 // pred_region
      %42 = dma.done [#allocation6], 384
    $region21: #{tpu_custom_call.1} parent=1 // pred_fallthru
      _
    %v43 = vld [vmem:[#allocation2] sm:$0xff]
    %v44 = vld [vmem:[#allocation2 + $0x8] sm:$0xff]
    %v45 = vld [vmem:[#allocation5] sm:$0xff]
    %v46 = vld [vmem:[#allocation5 + $0x8] sm:$0xff]
    %v47 = vld [vmem:[#allocation5 + $0x10] sm:$0xff]
    %v48 = vld [vmem:[%s2] sm:$0x1]
    %v50 = vlaneseq
    %v51 = vshrl.u32 %v50, 7
    %v52 = vsub.s32 0, %v51
    %v53 = vrot.slane %v48, %v52
    %vm55 = vcmask 195584
    %v57 = vsel %vm55, %v43, 0
    %v60 = vsel %vm55, %v44, 0
    %62 = vmatprep.subr.mxu0 0.0
    %63 = vmatpush1.msra.mxu0 0.0
    %64 = vmatprep.subr.mxu0 0.0
    %65 = vmatpush1.msra.mxu0 0.0
    %66 = vmatprep.subr.mxu0 0.0
    %67 = vmatpush1.msra.mxu0 0.0
    %68 = vmatprep.subr.mxu0 0.0
    %69 = vmatpush1.msra.mxu0 0.0
    %70 = vmatprep.subr.mxu0 0.0
    %71 = vmatpush1.msra.mxu0 0.0
    %72 = vmatprep.subr.mxu0 0.0
    %73 = vmatpush1.msra.mxu0 0.0
    %74 = vmatprep.subr.mxu0 0.0
    %75 = vmatpush1.msra.mxu0 0.0
    %76 = vmatprep.subr.mxu0 0.0
    %77 = vmatpush1.msra.mxu0 0.0
    %78 = vmatprep.subr.mxu0 0.0
    %79 = vmatpush1.msra.mxu0 0.0
    %80 = vmatprep.subr.mxu0 0.0
    %81 = vmatpush1.msra.mxu0 0.0
    %82 = vmatprep.subr.mxu0 0.0
    %83 = vmatpush1.msra.mxu0 0.0
    %84 = vmatprep.subr.mxu0 0.0
    %85 = vmatpush1.msra.mxu0 0.0
    %86 = vmatprep.subr.mxu0 0.0
    %87 = vmatpush1.msra.mxu0 0.0
    %88 = vmatprep.subr.mxu0 0.0
    %89 = vmatpush1.msra.mxu0 %v47
    %90 = vmatprep.subr.mxu0 0.0
    %91 = vmatpush1.msra.mxu0 %v46
    %92 = vmatprep.subr.mxu0 0.0
    %93 = vmatpush1.msra.mxu0 %v45
    %94 = vmatprep.subr.mxu0 0.0
    %95 = vmatpush2.msra.mxu0 0.0
    %96 = vmatprep.subr.mxu0 0.0
    %97 = vmatpush2.msra.mxu0 0.0
    %98 = vmatprep.subr.mxu0 0.0
    %99 = vmatpush2.msra.mxu0 0.0
    %100 = vmatprep.subr.mxu0 0.0
    %101 = vmatpush2.msra.mxu0 0.0
    %102 = vmatprep.subr.mxu0 0.0
    %103 = vmatpush2.msra.mxu0 0.0
    %104 = vmatprep.subr.mxu0 0.0
    %105 = vmatpush2.msra.mxu0 0.0
    %106 = vmatprep.subr.mxu0 0.0
    %107 = vmatpush2.msra.mxu0 0.0
    %108 = vmatprep.subr.mxu0 0.0
    %109 = vmatpush2.msra.mxu0 0.0
    %110 = vmatprep.subr.mxu0 0.0
    %111 = vmatpush2.msra.mxu0 0.0
    %112 = vmatprep.subr.mxu0 0.0
    %113 = vmatpush2.msra.mxu0 0.0
    %114 = vmatprep.subr.mxu0 0.0
    %115 = vmatpush2.msra.mxu0 0.0
    %116 = vmatprep.subr.mxu0 0.0
    %117 = vmatpush2.msra.mxu0 0.0
    %118 = vmatprep.subr.mxu0 0.0
    %119 = vmatpush2.msra.mxu0 0.0
    %120 = vmatprep.subr.mxu0 0.0
    %121 = vmatpush2.msra.mxu0 0.0
    %122 = vmatprep.subr.mxu0 0.0
    %123 = vmatpush2.msra.mxu0 0.0
    %124 = vmatprep.subr.mxu0 0.0
    %125 = vmatpush2.msra.mxu0 0.0
    %126 = vmatprep.mubr.f32.mxu0 0.0
    %127 = vmatmul.mubr.f32.gmra.mxu0 %v57
    %v128 = vpop.f32.mrf.mxu0
    %v129 = vadd.f32 %v53, %v128
    %v130 = vpop.f32.mrf.mxu0
    %131 = vmatprep.mubr.f32.mxu0 0.0
    %132 = vmatmul.mubr.f32.gmra.mxu0 %v60
    %v133 = vpop.f32.mrf.mxu0
    %v134 = vadd.f32 %v53, %v133
    %v135 = vpop.f32.mrf.mxu0
    %136 = vdwg.mxu0
    %137 = vst [vmem:[#allocation7] sm:$0xff] %v129
    %138 = vst [vmem:[#allocation7 + $0x8] sm:$0xff] %v134
    // Predicated region
    $region22: #{tpu_custom_call.1} parent=1 // pred_check
      _
    $region23: #{tpu_custom_call.1} parent=1 // pred_check_branch
      %140 = sbr.rel (0) target = $region25
    $region24: #{tpu_custom_call.1} parent=1 // pred_region
      %s142 = ssub.s32 256, 256
      %143 = vsyncadd [#allocation4], %s142
      %s144 = sshll.u32 [#allocation7], 4
      %s145 = int_to_ptr.vmem [resolvable:$true] %s144
      %150 = dma.vmem_to_hbm [thread:$0]  %s145, 256, %s3, [#allocation4], 128, 128, 8
    $region25: #{tpu_custom_call.1} parent=1 // pred_fallthru
      _
    // Predicated region
    $region26: #{tpu_custom_call.1} parent=1 // pred_check
      _
    $region27: #{tpu_custom_call.1} parent=1 // pred_check_branch
      %152 = sbr.rel (0) target = $region29
    $region28: #{tpu_custom_call.1} parent=1 // pred_region
      %153 = dma.done [#allocation4], 256
    $region29: #{tpu_custom_call.1} parent=1 // pred_fallthru
      _
    %154 = vsyncpa [#allocation3], 1
    %155 = vsyncpa [#allocation6], 1
    %156 = vsyncpa [#allocation4], 1

</llo_original>
